<compile_context>
chip_gen: v7x
topology: tpu7x:2x2x1
jax: 0.10.0
libtpu: 0.0.40
codegen_flags: <defaults>
</compile_context>

<pallas_src>
import jax
import jax.numpy as jnp
from jax.experimental import pallas as pl
from jax.experimental.pallas import tpu as pltpu


def _round_up(a, b):
    return -(-a // b) * b


def linear_relu_kernel(x_ref, w_ref, o_ref):
    # x_ref: (tm, Kp) input tile in its native dtype (cast to bf16 here, not in wrapper)
    # w_ref: (Kp, Np) bf16 block-diagonal weight (constant index_map -> stays resident)
    # o_ref: (tm, Np) output tile
    x = x_ref[...].astype(jnp.bfloat16)
    y = jnp.dot(x, w_ref[...], preferred_element_type=jnp.float32)
    o_ref[...] = jnp.maximum(y, 0.0).astype(o_ref.dtype)


def upsampler_forward(x, w_t, *, tm=None, out_dtype=None):
    """relu(x @ w_t).  x: (..., K);  w_t: (K, N) == pytorch_weight.T;  returns (..., N)."""
    *lead, K = x.shape
    N = w_t.shape[1]
    out_dtype = x.dtype if out_dtype is None else out_dtype

    # ---- lane-dense packing: put `pack` logical rows side-by-side along the lane axis.
    pack = max(1, 128 // max(K, N))
    Kp, Np = pack * K, pack * N

    x2 = x.reshape(-1, K)            # NO dtype cast here (done in-kernel)
    M = x2.shape[0]
    Mp = -(-M // pack)               # packed rows
    M_pad = Mp * pack                # pad only to a multiple of `pack` (< pack rows)
    if M_pad != M:
        x2 = jnp.pad(x2, ((0, M_pad - M), (0, 0)))
    xp = x2.reshape(Mp, Kp)

    x_item = jnp.dtype(x.dtype).itemsize
    out_item = jnp.dtype(out_dtype).itemsize

    # ---- tile size (packed rows): big by default, VMEM-bounded, >=2 grid steps when possible.
    vmem_budget = 12 * 1024 * 1024                       # safe under v5e's 16 MiB scoped default
    per_row_bytes = 2 * Kp * x_item + 2 * Np * out_item  # double-buffered in + out tiles
    tm_vmem = max(16, (vmem_budget // per_row_bytes) // 16 * 16)
    tm_want = 4096 if tm is None else max(16, _round_up(tm, 16))
    tm_two_steps = _round_up(-(-Mp // 2), 16)            # don't exceed what 2 steps need (v7x megacore)
    tm_eff = max(16, min(tm_want, tm_vmem, tm_two_steps))

    grid = (pl.cdiv(Mp, tm_eff),)    # partial last block is clipped/masked by Pallas

    # Block-diagonal weight: kron(I_pack, W^T) -> (Kp, Np), bf16, at most 32 KiB.
    w_bd = jnp.kron(jnp.eye(pack, dtype=jnp.bfloat16), w_t.astype(jnp.bfloat16))

    cost = pl.CostEstimate(
        flops=2 * Mp * Kp * Np,
        transcendentals=0,
        bytes_accessed=int(Mp * Kp * x_item + Kp * Np * 2 + Mp * Np * out_item),
    )

    vmem_needed = (2 * tm_eff * Kp * x_item      # double-buffered input tiles
                   + 2 * tm_eff * Np * out_item  # double-buffered output tiles
                   + 2 * Kp * Np * 2)            # weight (bf16)
    vmem_limit = int(min(max(vmem_needed + (2 << 20), 16 << 20), 48 << 20))

    out = pl.pallas_call(
        linear_relu_kernel,
        out_shape=jax.ShapeDtypeStruct((Mp, Np), out_dtype),
        grid_spec=pltpu.PrefetchScalarGridSpec(
            num_scalar_prefetch=0,
            grid=grid,
            in_specs=[
                pl.BlockSpec((tm_eff, Kp), lambda i: (i, 0)),   # row tile of packed input
                pl.BlockSpec((Kp, Np), lambda i: (0, 0)),       # constant index -> resident weight
            ],
            out_specs=pl.BlockSpec((tm_eff, Np), lambda i: (i, 0)),
        ),
        compiler_params=pltpu.CompilerParams(
            dimension_semantics=("parallel",),   # shards the row axis across v7x's 2 TensorCores
            vmem_limit_bytes=vmem_limit,
        ),
        cost_estimate=cost,
    )(xp, w_bd)

    # Unpack lanes back to logical rows; strip the (< pack) padded rows.
    y = out.reshape(M_pad, N)
    if M_pad != M:
        y = y[:M]
    return y.reshape(*lead, N)


if __name__ == "__main__":
    # Module config: c_in=32, reduction=1  ->  Linear(32, 32, bias=False) + ReLU
    c_in = 32
    reduction = 1
    in_features = c_in // reduction
    out_features = c_in

    key = jax.random.PRNGKey(0)
    k_x, k_w, k_x2 = jax.random.split(key, 3)

    # Deterministic synthetic parameters (PyTorch weight shape: (out, in)).
    w = jax.random.uniform(
        k_w, (out_features, in_features), dtype=jnp.float32,
        minval=-(1.0 / in_features) ** 0.5, maxval=(1.0 / in_features) ** 0.5,
    )
    w_t = w.T  # (in_features, out_features)

    def ref(xv):
        # Reference with bf16-rounded operands (kernel does a bf16 matmul, f32 accumulation).
        xb = xv.astype(jnp.bfloat16).astype(jnp.float32)
        wb = w_t.astype(jnp.bfloat16).astype(jnp.float32)
        return jnp.maximum(
            jnp.einsum("...k,kn->...n", xb, wb, preferred_element_type=jnp.float32), 0.0
        )

    # Example input: (batch=2, seq=8, in_features=32)  -> single grid step
    x = jax.random.normal(k_x, (2, 8, in_features), dtype=jnp.float32)
    y = jax.block_until_ready(upsampler_forward(x, w_t))
    assert y.shape == (2, 8, out_features)
    assert jnp.allclose(y, ref(x), atol=1e-3, rtol=1e-3)

    # Ragged path: M = 3*37 = 111 -> needs <pack row pad, 2 grid steps, masked last block.
    x_big = jax.random.normal(k_x2, (3, 37, in_features), dtype=jnp.float32)
    y_big = jax.block_until_ready(upsampler_forward(x_big, w_t))
    assert y_big.shape == (3, 37, out_features)
    assert jnp.allclose(y_big, ref(x_big), atol=1e-3, rtol=1e-3)

    print("KERNEL_OK")
</pallas_src>

<mosaic_0001>
module attributes {stable_mosaic.version = 11 : i64} {
  func.func @linear_relu_kernel(%arg0: i32, %arg1: memref<16x128xf32, #tpu.memory_space<vmem>>, %arg2: memref<128x128xbf16, #tpu.memory_space<vmem>>, %arg3: memref<16x128xf32, #tpu.memory_space<vmem>>) attributes {dimension_semantics = [#tpu.dimension_semantics<parallel>], iteration_bounds = array<i64: 1>, scalar_prefetch = 0 : i64, scratch_operands = 0 : i64, tpu.core_type = #tpu.core_type<tc>, window_params = [{transform_indices = @transform_0, window_bounds = array<i64: 16, 128>}, {pipeline_mode = #tpu.pipeline_mode<synchronous>, transform_indices = @transform_1, window_bounds = array<i64: 128, 128>}, {transform_indices = @transform_2, window_bounds = array<i64: 16, 128>}]} {
    %c0 = arith.constant 0 : index
    %c0_0 = arith.constant 0 : index
    %0 = vector.load %arg1[%c0, %c0_0] : memref<16x128xf32, #tpu.memory_space<vmem>>, vector<16x128xf32>
    %1 = arith.truncf %0 : vector<16x128xf32> to vector<16x128xbf16>
    %c0_1 = arith.constant 0 : index
    %c0_2 = arith.constant 0 : index
    %2 = vector.load %arg2[%c0_1, %c0_2] : memref<128x128xbf16, #tpu.memory_space<vmem>>, vector<128x128xbf16>
    %cst = arith.constant dense<0.000000e+00> : vector<16x128xf32>
    %3 = tpu.matmul %1, %2, %cst {dimension_numbers = #tpu.dot_dimension_numbers<[1], [0], [0], [1], [0, 0, 1, 1], [], []>} : vector<16x128xbf16>, vector<128x128xbf16>, vector<16x128xf32> -> vector<16x128xf32>
    %cst_3 = arith.constant 0.000000e+00 : f32
    %4 = vector.broadcast %cst_3 : f32 to vector<16x128xf32>
    %5 = arith.maximumf %3, %4 : vector<16x128xf32>
    %c0_4 = arith.constant 0 : index
    %c0_5 = arith.constant 0 : index
    %6 = vector.load %arg3[%c0_4, %c0_5] : memref<16x128xf32, #tpu.memory_space<vmem>>, vector<16x128xf32>
    tpu.vector_store %arg3[%c0_4, %c0_5], %5 {strides = array<i32>} : memref<16x128xf32, #tpu.memory_space<vmem>>, vector<16x128xf32>,
    return
  }
  func.func @transform_0(%arg0: i32) -> (i32, i32) {
    %c0_i32 = arith.constant 0 : i32
    %c0_i32_0 = arith.constant 0 : i32
    return %arg0, %c0_i32 : i32, i32
  }
  func.func @transform_1(%arg0: i32) -> (i32, i32) {
    %c0_i32 = arith.constant 0 : i32
    %c0_i32_0 = arith.constant 0 : i32
    %c0_i32_1 = arith.constant 0 : i32
    return %c0_i32, %c0_i32_0 : i32, i32
  }
  func.func @transform_2(%arg0: i32) -> (i32, i32) {
    %c0_i32 = arith.constant 0 : i32
    %c0_i32_0 = arith.constant 0 : i32
    return %arg0, %c0_i32 : i32, i32
  }
}

</mosaic_0001>

<llo_original>
// kernel: tpu_custom_call.1
$region0: #{tpu_custom_call.1}
  #allocation0 [shape = 'u32[]', space=smem, size = 0x4, offset = 0x4, fixed_abs, tag = 'smem constant byte address 0x4 - core index']
  #allocation1 [shape = 'u32[144,128]{1,0:T(1,128)}', space=vmem, size = 0x12000, scoped, tag = 'internal scratch']
  %s0 = inlined_call_operand.hbm [shape: f32[4,128], index: 0, kind: input, shape index: {}]
  %s1 = inlined_call_operand.hbm [shape: bf16[128,128], index: 1, kind: input, shape index: {}]
  %s2 = inlined_call_operand.hbm [shape: f32[4,128], index: 2, kind: output, shape index: {}]
  %s3 = sld [smem:[#allocation0]]
  $region26: #{tpu_custom_call.1} parent=0
    _
  %s5 = ssub.s32 1, %s3
  %s6 = scalar_select 0, %s5, %s3
  $region1: #{tpu_custom_call.1} parent=0
    #allocation2 [shape = 'u8[8192]{0}', space=vmem, size = 0x2000, scoped, tag = 'input window, operand 0, single buffered']
    #allocation3 [shape = 's32[1]{0}', space=sflag, size = 0x4, scoped, tag = 'scoped memory for tpu_custom_call.1']
    #allocation4 [shape = 's32[1]{0}', space=sflag, size = 0x4, scoped, tag = 'scoped memory for tpu_custom_call.1']
    #allocation5 [shape = 'u8[32768]{0}', space=vmem, size = 0x8000, scoped, tag = 'input window, operand 1, single buffered']
    #allocation6 [shape = 's32[1]{0}', space=sflag, size = 0x4, scoped, tag = 'scoped memory for tpu_custom_call.1']
    #allocation7 [shape = 'u8[8192]{0}', space=vmem, size = 0x2000, scoped, tag = 'output window, operand 0, single buffered']
    %7 = vsyncpa [#allocation3], 0
    %8 = vsyncpa [#allocation6], 0
    %9 = vsyncpa [#allocation4], 0
    // Predicated region
    $region2: #{tpu_custom_call.1} parent=1 // pred_check
      _
    $region3: #{tpu_custom_call.1} parent=1 // pred_check_branch
      %11 = sbr.rel (0) target = $region5
    $region4: #{tpu_custom_call.1} parent=1 // pred_region
      %s13 = ssub.s32 256, 64
      %14 = vsyncadd [#allocation3], %s13
      %s15 = sshll.u32 [#allocation2], 4
      %s16 = int_to_ptr.vmem [resolvable:$true] %s15
      %21 = dma.hbm_to_vmem [thread:$0]  %s0, 64, %s16, [#allocation3], 64, 64, 4
    $region5: #{tpu_custom_call.1} parent=1 // pred_fallthru
      _
    // Predicated region
    $region6: #{tpu_custom_call.1} parent=1 // pred_check
      _
    $region7: #{tpu_custom_call.1} parent=1 // pred_check_branch
      %23 = sbr.rel (0) target = $region9
    $region8: #{tpu_custom_call.1} parent=1 // pred_region
      %s25 = ssub.s32 1024, 1024
      %26 = vsyncadd [#allocation6], %s25
      %s27 = sshll.u32 [#allocation5], 4
      %s28 = int_to_ptr.vmem [resolvable:$true] %s27
      %33 = dma.hbm_to_vmem [thread:$0]  %s1, 1024, %s28, [#allocation6], 64, 64, 4
    $region9: #{tpu_custom_call.1} parent=1 // pred_fallthru
      _
    // Predicated region
    $region10: #{tpu_custom_call.1} parent=1 // pred_check
      _
    $region11: #{tpu_custom_call.1} parent=1 // pred_check_branch
      %35 = sbr.rel (0) target = $region13
    $region12: #{tpu_custom_call.1} parent=1 // pred_region
      %36 = dma.done [#allocation3], 256
    $region13: #{tpu_custom_call.1} parent=1 // pred_fallthru
      _
    // Predicated region
    $region14: #{tpu_custom_call.1} parent=1 // pred_check
      _
    $region15: #{tpu_custom_call.1} parent=1 // pred_check_branch
      %38 = sbr.rel (0) target = $region17
    $region16: #{tpu_custom_call.1} parent=1 // pred_region
      %39 = dma.done [#allocation6], 1024
    $region17: #{tpu_custom_call.1} parent=1 // pred_fallthru
      _
    %v41 = vld [vmem:[#allocation2] sm:$0xff]
    %v42 = vld [vmem:[#allocation2 + $0x8] sm:$0xff]
    %v43 = vpack.c.bf16 %v42, %v41
    %v44 = vld [vmem:[#allocation5] sm:$0xf]
    %v45 = vld [vmem:[#allocation5 + $0x4] sm:$0xf]
    %v46 = vld [vmem:[#allocation5 + $0x8] sm:$0xf]
    %v47 = vld [vmem:[#allocation5 + $0xc] sm:$0xf]
    %v48 = vld [vmem:[#allocation5 + $0x10] sm:$0xf]
    %v49 = vld [vmem:[#allocation5 + $0x14] sm:$0xf]
    %v50 = vld [vmem:[#allocation5 + $0x18] sm:$0xf]
    %v51 = vld [vmem:[#allocation5 + $0x1c] sm:$0xf]
    %v52 = vld [vmem:[#allocation5 + $0x20] sm:$0xf]
    %v53 = vld [vmem:[#allocation5 + $0x24] sm:$0xf]
    %v54 = vld [vmem:[#allocation5 + $0x28] sm:$0xf]
    %v55 = vld [vmem:[#allocation5 + $0x2c] sm:$0xf]
    %v56 = vld [vmem:[#allocation5 + $0x30] sm:$0xf]
    %v57 = vld [vmem:[#allocation5 + $0x34] sm:$0xf]
    %v58 = vld [vmem:[#allocation5 + $0x38] sm:$0xf]
    %v59 = vld [vmem:[#allocation5 + $0x3c] sm:$0xf]
    %v76 = vunpack.c.l.b16 %v44
    %v77 = vunpack.c.l.b16 %v45
    %v78 = vunpack.c.l.b16 %v46
    %v79 = vunpack.c.l.b16 %v47
    %v80 = vunpack.c.l.b16 %v48
    %v81 = vunpack.c.l.b16 %v49
    %v82 = vunpack.c.l.b16 %v50
    %v83 = vunpack.c.l.b16 %v51
    %v84 = vunpack.c.l.b16 %v52
    %v85 = vunpack.c.l.b16 %v53
    %v86 = vunpack.c.l.b16 %v54
    %v87 = vunpack.c.l.b16 %v55
    %v88 = vunpack.c.l.b16 %v56
    %v89 = vunpack.c.l.b16 %v57
    %v90 = vunpack.c.l.b16 %v58
    %v91 = vunpack.c.l.b16 %v59
    %v92 = vpack.c.b16 %v77, %v76
    %v93 = vpack.c.b16 %v79, %v78
    %v94 = vpack.c.b16 %v81, %v80
    %v95 = vpack.c.b16 %v83, %v82
    %v96 = vpack.c.b16 %v85, %v84
    %v97 = vpack.c.b16 %v87, %v86
    %v98 = vpack.c.b16 %v89, %v88
    %v99 = vpack.c.b16 %v91, %v90
    %108 = vmatprep.subr.bf16.mxu0 0
    %109 = vmatpush1.bf16.msra.mxu0 %v92
    %110 = vmatprep.subr.bf16.mxu0 0
    %111 = vmatpush1.bf16.msra.mxu0 %v93
    %112 = vmatprep.subr.bf16.mxu0 0
    %113 = vmatpush1.bf16.msra.mxu0 %v94
    %114 = vmatprep.subr.bf16.mxu0 0
    %115 = vmatpush1.bf16.msra.mxu0 %v95
    %116 = vmatprep.subr.bf16.mxu0 0
    %117 = vmatpush1.bf16.msra.mxu0 %v96
    %118 = vmatprep.subr.bf16.mxu0 0
    %119 = vmatpush1.bf16.msra.mxu0 %v97
    %120 = vmatprep.subr.bf16.mxu0 0
    %121 = vmatpush1.bf16.msra.mxu0 %v98
    %122 = vmatprep.subr.bf16.mxu0 0
    %123 = vmatpush1.bf16.msra.mxu0 %v99
    %124 = vmatprep.subr.bf16.mxu0 0
    %125 = vmatpush1.bf16.msra.mxu0 0
    %126 = vmatprep.subr.bf16.mxu0 0
    %127 = vmatpush1.bf16.msra.mxu0 0
    %128 = vmatprep.subr.bf16.mxu0 0
    %129 = vmatpush1.bf16.msra.mxu0 0
    %130 = vmatprep.subr.bf16.mxu0 0
    %131 = vmatpush1.bf16.msra.mxu0 0
    %132 = vmatprep.subr.bf16.mxu0 0
    %133 = vmatpush1.bf16.msra.mxu0 0
    %134 = vmatprep.subr.bf16.mxu0 0
    %135 = vmatpush1.bf16.msra.mxu0 0
    %136 = vmatprep.subr.bf16.mxu0 0
    %137 = vmatpush1.bf16.msra.mxu0 0
    %138 = vmatprep.subr.bf16.mxu0 0
    %139 = vmatpush1.bf16.msra.mxu0 0
    %140 = vmatprep.mubr.bf16.mxu0 0
    %141 = vmatmul.mubr.bf16.gmra.mrb[0].mxu0 %v43
    %v142 = vpop.f32.mrb[0].mxu0
    %v143 = vadd.f32 0.0, %v142
    %v144 = vpop.f32.mrb[0].mxu0
    %v145 = vpop.f32.mrb[0].mxu0
    %v146 = vadd.f32 0.0, %v145
    %v147 = vpop.f32.mrb[0].mxu0
    %148 = vdwg.mxu0
    %v149 = vmax.f32 %v143, 0.0
    %v150 = vmax.f32 %v146, 0.0
    %151 = vst [vmem:[#allocation7] sm:$0xff] %v149
    %152 = vst [vmem:[#allocation7 + $0x8] sm:$0xff] %v150
    // Predicated region
    $region18: #{tpu_custom_call.1} parent=1 // pred_check
      _
    $region19: #{tpu_custom_call.1} parent=1 // pred_check_branch
      %154 = sbr.rel (0) target = $region21
    $region20: #{tpu_custom_call.1} parent=1 // pred_region
      %s156 = ssub.s32 256, 64
      %157 = vsyncadd [#allocation4], %s156
      %s158 = sshll.u32 [#allocation7], 4
      %s159 = int_to_ptr.vmem [resolvable:$true] %s158
      %164 = dma.vmem_to_hbm [thread:$0]  %s159, 64, %s2, [#allocation4], 64, 64, 4
    $region21: #{tpu_custom_call.1} parent=1 // pred_fallthru
      _
    // Predicated region
    $region22: #{tpu_custom_call.1} parent=1 // pred_check
      _
    $region23: #{tpu_custom_call.1} parent=1 // pred_check_branch
      %166 = sbr.rel (0) target = $region25
    $region24: #{tpu_custom_call.1} parent=1 // pred_region
      %167 = dma.done [#allocation4], 256
    $region25: #{tpu_custom_call.1} parent=1 // pred_fallthru
      _
    %168 = vsyncpa [#allocation3], 1
    %169 = vsyncpa [#allocation6], 1
    %170 = vsyncpa [#allocation4], 1

</llo_original>
